<compile_context>
chip_gen: v7x
topology: tpu7x:2x2x1
jax: 0.10.0
libtpu: 0.0.40
codegen_flags: <defaults>
</compile_context>

<pallas_src>
import functools

import jax
import jax.numpy as jnp
from jax.experimental import pallas as pl
from jax.experimental.pallas import tpu as pltpu


def _source_kernel(x_ref, w1_ref, b1_ref, w2_ref, b2_ref, g1_ref, g2_ref,
                   hard_ref, soft_ref, *, inv_tau):
    x = x_ref[...]                                                        # (TB, D)
    # fc + relu (MXU matmul, f32 accumulation)
    h = jnp.dot(x, w1_ref[...], preferred_element_type=jnp.float32) + b1_ref[...]
    h = jnp.maximum(h, 0.0)                                               # (TB, Hp)
    # a_head
    logits = jnp.dot(h, w2_ref[...], preferred_element_type=jnp.float32) + b2_ref[...]  # (TB, K)

    # --- hard gumbel-softmax sample (independent noise g1) ---
    # argmax of (logits + g1); softmax / tau-scaling dropped (monotone).
    y1 = logits + g1_ref[...]
    k = y1.shape[-1]
    iota = jax.lax.broadcasted_iota(jnp.int32, y1.shape, dimension=1)
    maxv = jnp.max(y1, axis=-1, keepdims=True)
    masked = jnp.where(y1 == maxv, iota, k)           # first index attaining max
    idx = jnp.min(masked, axis=-1, keepdims=True)
    hard_ref[...] = (iota == idx).astype(hard_ref.dtype)

    # --- soft gumbel-softmax sample (independent noise g2) ---
    y2 = (logits + g2_ref[...]) * inv_tau
    m = jnp.max(y2, axis=-1, keepdims=True)
    e = jnp.exp(y2 - m)
    denom = jnp.sum(e, axis=-1, keepdims=True)
    soft_ref[...] = (e * pl.reciprocal(denom, approx=False)).astype(soft_ref.dtype)


def source_forward(x, w_fc, b_fc, w_a, b_a, g1, g2, temp=1.0, block_b=512):
    """x: (B, input_dim) f32. Returns (hard_onehot, soft_probs), each (B, categorical_dim).

    Weights are stored (in_features, out_features) so the kernel computes x @ W.
    """
    B, D = x.shape
    H = w_fc.shape[1]
    K = w_a.shape[1]

    # Zero-pad the hidden dim to a multiple of 128 for lane-aligned MXU tiles.
    # relu(0 + 0) = 0 and the padded rows of w_a are zero, so numerics are unchanged.
    Hp = ((H + 127) // 128) * 128
    b_fc = jnp.reshape(b_fc, (1, H))
    b_a = jnp.reshape(b_a, (1, K))
    if Hp != H:
        w_fc = jnp.pad(w_fc, ((0, 0), (0, Hp - H)))
        b_fc = jnp.pad(b_fc, ((0, 0), (0, Hp - H)))
        w_a = jnp.pad(w_a, ((0, Hp - H), (0, 0)))

    # Batch tiling: one block if B is small, otherwise block_b rows per grid step
    # (block_b must be a multiple of 8; 512 keeps VMEM well inside v7x's budget
    # even with double-buffering of x / g1 / g2 / both outputs).
    tb = B if B <= block_b else block_b
    grid = (pl.cdiv(B, tb),)

    kernel = functools.partial(_source_kernel, inv_tau=float(1.0 / temp))

    def row_spec(cols):
        return pl.BlockSpec((tb, cols), lambda i: (i, 0))

    def full_spec(shape):
        return pl.BlockSpec(shape, lambda i: (0, 0))

    return pl.pallas_call(
        kernel,
        out_shape=(jax.ShapeDtypeStruct((B, K), jnp.float32),
                   jax.ShapeDtypeStruct((B, K), jnp.float32)),
        grid=grid,
        in_specs=[row_spec(D),            # x
                  full_spec(w_fc.shape),  # w_fc (resident across the batch grid)
                  full_spec(b_fc.shape),  # b_fc
                  full_spec(w_a.shape),   # w_a
                  full_spec(b_a.shape),   # b_a
                  row_spec(K),            # g1
                  row_spec(K)],           # g2
        out_specs=(row_spec(K), row_spec(K)),
        compiler_params=pltpu.CompilerParams(
            dimension_semantics=("parallel",)),  # 2x on v7x (2 TCs); harmless on v5e/v6e
    )(x, w_fc, b_fc, w_a, b_a, g1, g2)


if __name__ == "__main__":
    B, INPUT_DIM, HIDDEN, CAT_DIM = 8, 32, 200, 8

    key = jax.random.PRNGKey(0)
    kx, kw1, kb1, kw2, kb2, kg1, kg2 = jax.random.split(key, 7)

    # Deterministic parameter init (synthetic; shapes match nn.Linear(in, out)).
    x = jax.random.normal(kx, (B, INPUT_DIM), dtype=jnp.float32)
    w_fc = jax.random.normal(kw1, (INPUT_DIM, HIDDEN), dtype=jnp.float32) * (1.0 / jnp.sqrt(INPUT_DIM))
    b_fc = jax.random.normal(kb1, (1, HIDDEN), dtype=jnp.float32) * 0.01
    w_a = jax.random.normal(kw2, (HIDDEN, CAT_DIM), dtype=jnp.float32) * (1.0 / jnp.sqrt(HIDDEN))
    b_a = jax.random.normal(kb2, (1, CAT_DIM), dtype=jnp.float32) * 0.01

    # Independent Gumbel(0,1) noise for the two gumbel_softmax calls.
    g1 = jax.random.gumbel(kg1, (B, CAT_DIM), dtype=jnp.float32)
    g2 = jax.random.gumbel(kg2, (B, CAT_DIM), dtype=jnp.float32)

    hard, soft = source_forward(x, w_fc, b_fc, w_a, b_a, g1, g2, temp=1.0)
    jax.block_until_ready((hard, soft))

    # Pure-JAX reference for correctness.
    h_ref = jnp.maximum(x @ w_fc + b_fc, 0.0)
    logits_ref = h_ref @ w_a + b_a
    soft_ref = jax.nn.softmax(logits_ref + g2, axis=-1)
    hard_idx_ref = jnp.argmax(logits_ref + g1, axis=-1)
    hard_ref = jax.nn.one_hot(hard_idx_ref, CAT_DIM, dtype=jnp.float32)

    assert hard.shape == (B, CAT_DIM) and soft.shape == (B, CAT_DIM)
    assert jnp.allclose(jnp.sum(hard, axis=-1), 1.0)
    assert jnp.allclose(jnp.sum(soft, axis=-1), 1.0, atol=1e-5)
    assert jnp.allclose(hard, hard_ref)
    assert jnp.allclose(soft, soft_ref, atol=1e-5, rtol=1e-5)

    print("KERNEL_OK")
</pallas_src>

<mosaic_0001>
module attributes {stable_mosaic.version = 11 : i64} {
  func.func @_source_kernel(%arg0: i32, %arg1: memref<8x32xf32, #tpu.memory_space<vmem>>, %arg2: memref<32x256xf32, #tpu.memory_space<vmem>>, %arg3: memref<1x256xf32, #tpu.memory_space<vmem>>, %arg4: memref<256x8xf32, #tpu.memory_space<vmem>>, %arg5: memref<1x8xf32, #tpu.memory_space<vmem>>, %arg6: memref<8x8xf32, #tpu.memory_space<vmem>>, %arg7: memref<8x8xf32, #tpu.memory_space<vmem>>, %arg8: memref<8x8xf32, #tpu.memory_space<vmem>>, %arg9: memref<8x8xf32, #tpu.memory_space<vmem>>) attributes {dimension_semantics = [#tpu.dimension_semantics<parallel>], iteration_bounds = array<i64: 1>, scalar_prefetch = 0 : i64, scratch_operands = 0 : i64, tpu.core_type = #tpu.core_type<tc>, window_params = [{transform_indices = @transform_0, window_bounds = array<i64: 8, 32>}, {pipeline_mode = #tpu.pipeline_mode<synchronous>, transform_indices = @transform_1, window_bounds = array<i64: 32, 256>}, {pipeline_mode = #tpu.pipeline_mode<synchronous>, transform_indices = @transform_2, window_bounds = array<i64: 1, 256>}, {pipeline_mode = #tpu.pipeline_mode<synchronous>, transform_indices = @transform_3, window_bounds = array<i64: 256, 8>}, {pipeline_mode = #tpu.pipeline_mode<synchronous>, transform_indices = @transform_4, window_bounds = array<i64: 1, 8>}, {transform_indices = @transform_5, window_bounds = array<i64: 8, 8>}, {transform_indices = @transform_6, window_bounds = array<i64: 8, 8>}, {transform_indices = @transform_7, window_bounds = array<i64: 8, 8>}, {transform_indices = @transform_8, window_bounds = array<i64: 8, 8>}]} {
    %c0 = arith.constant 0 : index
    %c0_0 = arith.constant 0 : index
    %0 = vector.load %arg1[%c0, %c0_0] : memref<8x32xf32, #tpu.memory_space<vmem>>, vector<8x32xf32>
    %c0_1 = arith.constant 0 : index
    %c0_2 = arith.constant 0 : index
    %1 = vector.load %arg2[%c0_1, %c0_2] : memref<32x256xf32, #tpu.memory_space<vmem>>, vector<32x256xf32>
    %cst = arith.constant dense<0.000000e+00> : vector<8x256xf32>
    %2 = tpu.matmul %0, %1, %cst {dimension_numbers = #tpu.dot_dimension_numbers<[1], [0], [0], [1], [0, 0, 1, 1], [], []>} : vector<8x32xf32>, vector<32x256xf32>, vector<8x256xf32> -> vector<8x256xf32>
    %c0_3 = arith.constant 0 : index
    %c0_4 = arith.constant 0 : index
    %3 = vector.load %arg3[%c0_3, %c0_4] : memref<1x256xf32, #tpu.memory_space<vmem>>, vector<1x256xf32>
    %4 = vector.broadcast %3 : vector<1x256xf32> to vector<8x256xf32>
    %5 = arith.addf %2, %4 : vector<8x256xf32>
    %cst_5 = arith.constant 0.000000e+00 : f32
    %6 = vector.broadcast %cst_5 : f32 to vector<8x256xf32>
    %7 = arith.maximumf %5, %6 : vector<8x256xf32>
    %c0_6 = arith.constant 0 : index
    %c0_7 = arith.constant 0 : index
    %8 = vector.load %arg4[%c0_6, %c0_7] : memref<256x8xf32, #tpu.memory_space<vmem>>, vector<256x8xf32>
    %cst_8 = arith.constant dense<0.000000e+00> : vector<8x8xf32>
    %9 = tpu.matmul %7, %8, %cst_8 {dimension_numbers = #tpu.dot_dimension_numbers<[1], [0], [0], [1], [0, 0, 1, 1], [], []>} : vector<8x256xf32>, vector<256x8xf32>, vector<8x8xf32> -> vector<8x8xf32>
    %c0_9 = arith.constant 0 : index
    %c0_10 = arith.constant 0 : index
    %10 = vector.load %arg5[%c0_9, %c0_10] : memref<1x8xf32, #tpu.memory_space<vmem>>, vector<1x8xf32>
    %11 = vector.broadcast %10 : vector<1x8xf32> to vector<8x8xf32>
    %12 = arith.addf %9, %11 : vector<8x8xf32>
    %c0_11 = arith.constant 0 : index
    %c0_12 = arith.constant 0 : index
    %13 = vector.load %arg6[%c0_11, %c0_12] : memref<8x8xf32, #tpu.memory_space<vmem>>, vector<8x8xf32>
    %14 = arith.addf %12, %13 : vector<8x8xf32>
    %15 = tpu.iota {dimensions = array<i32: 1>} : vector<8x8xi32>
    %cst_13 = arith.constant dense<0xFF800000> : vector<8xf32>
    %16 = vector.multi_reduction <maximumf>, %14, %cst_13 [1] : vector<8x8xf32> to vector<8xf32>
    %17 = vector.shape_cast %16 : vector<8xf32> to vector<8x1xf32>
    %18 = vector.broadcast %17 : vector<8x1xf32> to vector<8x8xf32>
    %19 = arith.cmpf oeq, %14, %18 : vector<8x8xf32>
    %c8_i32 = arith.constant 8 : i32
    %20 = vector.broadcast %c8_i32 : i32 to vector<8x8xi32>
    %21 = arith.select %19, %15, %20 : vector<8x8xi1>, vector<8x8xi32>
    %cst_14 = arith.constant dense<2147483647> : vector<8xi32>
    %22 = vector.multi_reduction <minsi>, %21, %cst_14 [1] : vector<8x8xi32> to vector<8xi32>
    %23 = vector.shape_cast %22 : vector<8xi32> to vector<8x1xi32>
    %24 = vector.broadcast %23 : vector<8x1xi32> to vector<8x8xi32>
    %25 = arith.cmpi eq, %15, %24 : vector<8x8xi32>
    %26 = arith.extui %25 : vector<8x8xi1> to vector<8x8xi32>
    %27 = arith.sitofp %26 : vector<8x8xi32> to vector<8x8xf32>
    %c0_15 = arith.constant 0 : index
    %c0_16 = arith.constant 0 : index
    %28 = vector.load %arg8[%c0_15, %c0_16] : memref<8x8xf32, #tpu.memory_space<vmem>>, vector<8x8xf32>
    tpu.vector_store %arg8[%c0_15, %c0_16], %27 {strides = array<i32>} : memref<8x8xf32, #tpu.memory_space<vmem>>, vector<8x8xf32>,
    %c0_17 = arith.constant 0 : index
    %c0_18 = arith.constant 0 : index
    %29 = vector.load %arg7[%c0_17, %c0_18] : memref<8x8xf32, #tpu.memory_space<vmem>>, vector<8x8xf32>
    %30 = arith.addf %12, %29 : vector<8x8xf32>
    %cst_19 = arith.constant 1.000000e+00 : f32
    %31 = vector.broadcast %cst_19 : f32 to vector<8x8xf32>
    %32 = arith.mulf %30, %31 : vector<8x8xf32>
    %cst_20 = arith.constant dense<0xFF800000> : vector<8xf32>
    %33 = vector.multi_reduction <maximumf>, %32, %cst_20 [1] : vector<8x8xf32> to vector<8xf32>
    %34 = vector.shape_cast %33 : vector<8xf32> to vector<8x1xf32>
    %35 = vector.broadcast %34 : vector<8x1xf32> to vector<8x8xf32>
    %36 = arith.subf %32, %35 : vector<8x8xf32>
    %37 = math.exp %36 : vector<8x8xf32>
    %cst_21 = arith.constant dense<0.000000e+00> : vector<8xf32>
    %38 = vector.multi_reduction <add>, %37, %cst_21 [1] : vector<8x8xf32> to vector<8xf32>
    %39 = vector.shape_cast %38 : vector<8xf32> to vector<8x1xf32>
    %40 = tpu.reciprocal %39 : vector<8x1xf32> -> vector<8x1xf32>
    %41 = vector.broadcast %40 : vector<8x1xf32> to vector<8x8xf32>
    %42 = arith.mulf %37, %41 : vector<8x8xf32>
    %c0_22 = arith.constant 0 : index
    %c0_23 = arith.constant 0 : index
    %43 = vector.load %arg9[%c0_22, %c0_23] : memref<8x8xf32, #tpu.memory_space<vmem>>, vector<8x8xf32>
    tpu.vector_store %arg9[%c0_22, %c0_23], %42 {strides = array<i32>} : memref<8x8xf32, #tpu.memory_space<vmem>>, vector<8x8xf32>,
    return
  }
  func.func @transform_0(%arg0: i32) -> (i32, i32) {
    %c0_i32 = arith.constant 0 : i32
    %c0_i32_0 = arith.constant 0 : i32
    return %arg0, %c0_i32 : i32, i32
  }
  func.func @transform_1(%arg0: i32) -> (i32, i32) {
    %c0_i32 = arith.constant 0 : i32
    %c0_i32_0 = arith.constant 0 : i32
    %c0_i32_1 = arith.constant 0 : i32
    return %c0_i32, %c0_i32_0 : i32, i32
  }
  func.func @transform_2(%arg0: i32) -> (i32, i32) {
    %c0_i32 = arith.constant 0 : i32
    %c0_i32_0 = arith.constant 0 : i32
    %c0_i32_1 = arith.constant 0 : i32
    return %c0_i32, %c0_i32_0 : i32, i32
  }
  func.func @transform_3(%arg0: i32) -> (i32, i32) {
    %c0_i32 = arith.constant 0 : i32
    %c0_i32_0 = arith.constant 0 : i32
    %c0_i32_1 = arith.constant 0 : i32
    return %c0_i32, %c0_i32_0 : i32, i32
  }
  func.func @transform_4(%arg0: i32) -> (i32, i32) {
    %c0_i32 = arith.constant 0 : i32
    %c0_i32_0 = arith.constant 0 : i32
    %c0_i32_1 = arith.constant 0 : i32
    return %c0_i32, %c0_i32_0 : i32, i32
  }
  func.func @transform_5(%arg0: i32) -> (i32, i32) {
    %c0_i32 = arith.constant 0 : i32
    %c0_i32_0 = arith.constant 0 : i32
    return %arg0, %c0_i32 : i32, i32
  }
  func.func @transform_6(%arg0: i32) -> (i32, i32) {
    %c0_i32 = arith.constant 0 : i32
    %c0_i32_0 = arith.constant 0 : i32
    return %arg0, %c0_i32 : i32, i32
  }
  func.func @transform_7(%arg0: i32) -> (i32, i32) {
    %c0_i32 = arith.constant 0 : i32
    %c0_i32_0 = arith.constant 0 : i32
    return %arg0, %c0_i32 : i32, i32
  }
  func.func @transform_8(%arg0: i32) -> (i32, i32) {
    %c0_i32 = arith.constant 0 : i32
    %c0_i32_0 = arith.constant 0 : i32
    return %arg0, %c0_i32 : i32, i32
  }
}

</mosaic_0001>

<llo_original>
// kernel: tpu_custom_call.1
$region0: #{tpu_custom_call.1}
  #allocation0 [shape = 'u32[]', space=smem, size = 0x4, offset = 0x4, fixed_abs, tag = 'smem constant byte address 0x4 - core index']
  #allocation1 [shape = 'u32[144,128]{1,0:T(1,128)}', space=vmem, size = 0x12000, scoped, tag = 'internal scratch']
  %s0 = inlined_call_operand.vmem [shape: f32[8,32], index: 0, kind: input, shape index: {}]
  %s1 = inlined_call_operand.vmem [shape: f32[32,256], index: 1, kind: input, shape index: {}]
  %s2 = inlined_call_operand.vmem [shape: f32[1,256], index: 2, kind: input, shape index: {}]
  %s3 = inlined_call_operand.vmem [shape: f32[256,8], index: 3, kind: input, shape index: {}]
  %s4 = inlined_call_operand.vmem [shape: f32[1,8], index: 4, kind: input, shape index: {}]
  %s5 = inlined_call_operand.vmem [shape: f32[8,8], index: 5, kind: input, shape index: {}]
  %s6 = inlined_call_operand.vmem [shape: f32[8,8], index: 6, kind: input, shape index: {}]
  %s7 = inlined_call_operand.hbm [shape: f32[8,8], index: 7, kind: output, shape index: {0}]
  %s8 = inlined_call_operand.hbm [shape: f32[8,8], index: 8, kind: output, shape index: {1}]
  %9 = xla_tuple %s7, %s8
  %s10 = sld [smem:[#allocation0]]
  $region46: #{tpu_custom_call.1} parent=0
    _
  %s12 = ssub.s32 1, %s10
  %s13 = scalar_select 0, %s12, %s10
  $region1: #{tpu_custom_call.1} parent=0
    #allocation2 [shape = 'u8[4096]{0}', space=vmem, size = 0x1000, scoped, tag = 'output window, operand 0, single buffered']
    #allocation3 [shape = 's32[1]{0}', space=sflag, size = 0x4, scoped, tag = 'scoped memory for tpu_custom_call.1']
    #allocation4 [shape = 'u8[4096]{0}', space=vmem, size = 0x1000, scoped, tag = 'output window, operand 1, single buffered']
    #allocation5 [shape = 's32[1]{0}', space=sflag, size = 0x4, scoped, tag = 'scoped memory for tpu_custom_call.1']
    %14 = vsyncpa [#allocation3], 0
    %15 = vsyncpa [#allocation5], 0
    // Predicated region
    $region2: #{tpu_custom_call.1} parent=1 // pred_check
      _
    $region3: #{tpu_custom_call.1} parent=1 // pred_check_branch
      %17 = sbr.rel (0) target = $region5
    $region4: #{tpu_custom_call.1} parent=1 // pred_region
      _
    $region5: #{tpu_custom_call.1} parent=1 // pred_fallthru
      _
    // Predicated region
    $region6: #{tpu_custom_call.1} parent=1 // pred_check
      _
    $region7: #{tpu_custom_call.1} parent=1 // pred_check_branch
      %19 = sbr.rel (0) target = $region9
    $region8: #{tpu_custom_call.1} parent=1 // pred_region
      _
    $region9: #{tpu_custom_call.1} parent=1 // pred_fallthru
      _
    // Predicated region
    $region10: #{tpu_custom_call.1} parent=1 // pred_check
      _
    $region11: #{tpu_custom_call.1} parent=1 // pred_check_branch
      %21 = sbr.rel (0) target = $region13
    $region12: #{tpu_custom_call.1} parent=1 // pred_region
      _
    $region13: #{tpu_custom_call.1} parent=1 // pred_fallthru
      _
    // Predicated region
    $region14: #{tpu_custom_call.1} parent=1 // pred_check
      _
    $region15: #{tpu_custom_call.1} parent=1 // pred_check_branch
      %23 = sbr.rel (0) target = $region17
    $region16: #{tpu_custom_call.1} parent=1 // pred_region
      _
    $region17: #{tpu_custom_call.1} parent=1 // pred_fallthru
      _
    // Predicated region
    $region18: #{tpu_custom_call.1} parent=1 // pred_check
      _
    $region19: #{tpu_custom_call.1} parent=1 // pred_check_branch
      %25 = sbr.rel (0) target = $region21
    $region20: #{tpu_custom_call.1} parent=1 // pred_region
      _
    $region21: #{tpu_custom_call.1} parent=1 // pred_fallthru
      _
    // Predicated region
    $region22: #{tpu_custom_call.1} parent=1 // pred_check
      _
    $region23: #{tpu_custom_call.1} parent=1 // pred_check_branch
      %27 = sbr.rel (0) target = $region25
    $region24: #{tpu_custom_call.1} parent=1 // pred_region
      _
    $region25: #{tpu_custom_call.1} parent=1 // pred_fallthru
      _
    // Predicated region
    $region26: #{tpu_custom_call.1} parent=1 // pred_check
      _
    $region27: #{tpu_custom_call.1} parent=1 // pred_check_branch
      %29 = sbr.rel (0) target = $region29
    $region28: #{tpu_custom_call.1} parent=1 // pred_region
      _
    $region29: #{tpu_custom_call.1} parent=1 // pred_fallthru
      _
    %v30 = vld [vmem:[%s0] sm:$0xff]
    %v31 = vld [vmem:[%s1] sm:$0xff]
    %v32 = vld [vmem:[%s1 + $0x8] sm:$0xff]
    %v33 = vld [vmem:[%s1 + $0x10] sm:$0xff]
    %v34 = vld [vmem:[%s1 + $0x18] sm:$0xff]
    %v35 = vld [vmem:[%s1 + $0x20] sm:$0xff]
    %v36 = vld [vmem:[%s1 + $0x28] sm:$0xff]
    %v37 = vld [vmem:[%s1 + $0x30] sm:$0xff]
    %v38 = vld [vmem:[%s1 + $0x38] sm:$0xff]
    %v39 = vld [vmem:[%s2] sm:$0x3]
    %v41 = vlaneseq
    %v42 = vshrl.u32 %v41, 7
    %v43 = vsub.s32 0, %v42
    %v44 = vrot.slane %v39, %v43
    %v45 = vlaneseq
    %v46 = vshrl.u32 %v45, 7
    %v47 = vsub.s32 1, %v46
    %v48 = vrot.slane %v39, %v47
    %vm51 = vcmask 261120
    %v53 = vsel %vm51, %v30, 0
    %55 = vmatprep.subr.mxu0 %v32
    %56 = vmatpush1.msra.mxu0 %v31
    %57 = vmatprep.subr.mxu0 %v34
    %58 = vmatpush1.msra.mxu0 %v33
    %59 = vmatprep.subr.mxu0 %v36
    %60 = vmatpush1.msra.mxu0 %v35
    %61 = vmatprep.subr.mxu0 %v38
    %62 = vmatpush1.msra.mxu0 %v37
    %63 = vmatprep.subr.mxu0 0.0
    %64 = vmatpush1.msra.mxu0 0.0
    %65 = vmatprep.subr.mxu0 0.0
    %66 = vmatpush1.msra.mxu0 0.0
    %67 = vmatprep.subr.mxu0 0.0
    %68 = vmatpush1.msra.mxu0 0.0
    %69 = vmatprep.subr.mxu0 0.0
    %70 = vmatpush1.msra.mxu0 0.0
    %71 = vmatprep.subr.mxu0 0.0
    %72 = vmatpush1.msra.mxu0 0.0
    %73 = vmatprep.subr.mxu0 0.0
    %74 = vmatpush1.msra.mxu0 0.0
    %75 = vmatprep.subr.mxu0 0.0
    %76 = vmatpush1.msra.mxu0 0.0
    %77 = vmatprep.subr.mxu0 0.0
    %78 = vmatpush1.msra.mxu0 0.0
    %79 = vmatprep.subr.mxu0 0.0
    %80 = vmatpush1.msra.mxu0 0.0
    %81 = vmatprep.subr.mxu0 0.0
    %82 = vmatpush1.msra.mxu0 0.0
    %83 = vmatprep.subr.mxu0 0.0
    %84 = vmatpush1.msra.mxu0 0.0
    %85 = vmatprep.subr.mxu0 0.0
    %86 = vmatpush1.msra.mxu0 0.0
    %87 = vmatprep.subr.mxu0 0.0
    %88 = vmatpush1.msra.mxu0 0.0
    %89 = vmatprep.subr.mxu0 0.0
    %90 = vmatpush1.msra.mxu0 0.0
    %91 = vmatprep.subr.mxu0 0.0
    %92 = vmatpush1.msra.mxu0 0.0
    %93 = vmatprep.subr.mxu0 0.0
    %94 = vmatpush1.msra.mxu0 0.0
    %95 = vmatprep.subr.mxu0 0.0
    %96 = vmatpush1.msra.mxu0 0.0
    %97 = vmatprep.subr.mxu0 0.0
    %98 = vmatpush1.msra.mxu0 0.0
    %99 = vmatprep.subr.mxu0 0.0
    %100 = vmatpush1.msra.mxu0 0.0
    %101 = vmatprep.subr.mxu0 0.0
    %102 = vmatpush1.msra.mxu0 0.0
    %103 = vmatprep.subr.mxu0 0.0
    %104 = vmatpush1.msra.mxu0 0.0
    %105 = vmatprep.subr.mxu0 0.0
    %106 = vmatpush1.msra.mxu0 0.0
    %107 = vmatprep.subr.mxu0 0.0
    %108 = vmatpush1.msra.mxu0 0.0
    %109 = vmatprep.subr.mxu0 0.0
    %110 = vmatpush1.msra.mxu0 0.0
    %111 = vmatprep.subr.mxu0 0.0
    %112 = vmatpush1.msra.mxu0 0.0
    %113 = vmatprep.subr.mxu0 0.0
    %114 = vmatpush1.msra.mxu0 0.0
    %115 = vmatprep.subr.mxu0 0.0
    %116 = vmatpush1.msra.mxu0 0.0
    %117 = vmatprep.subr.mxu0 0.0
    %118 = vmatpush1.msra.mxu0 0.0
    %119 = vmatprep.mubr.f32.mxu0 0.0
    %120 = vmatmul.mubr.f32.gmra.mrb[0].mxu0 %v53
    %v121 = vpop.f32.mrb[0].mxu0
    %v122 = vadd.f32 %v44, %v121
    %v123 = vpop.f32.mrb[0].mxu0
    %v124 = vadd.f32 %v48, %v123
    %125 = vdwg.mxu0
    %v126 = vmax.f32 %v122, 0.0
    %v127 = vmax.f32 %v124, 0.0
    %v128 = vld [vmem:[%s3] sm:$0xff]
    %v129 = vld [vmem:[%s3 + $0x8] sm:$0xff]
    %v130 = vld [vmem:[%s3 + $0x10] sm:$0xff]
    %v131 = vld [vmem:[%s3 + $0x18] sm:$0xff]
    %v132 = vld [vmem:[%s3 + $0x20] sm:$0xff]
    %v133 = vld [vmem:[%s3 + $0x28] sm:$0xff]
    %v134 = vld [vmem:[%s3 + $0x30] sm:$0xff]
    %v135 = vld [vmem:[%s3 + $0x38] sm:$0xff]
    %v136 = vld [vmem:[%s3 + $0x40] sm:$0xff]
    %v137 = vld [vmem:[%s3 + $0x48] sm:$0xff]
    %v138 = vld [vmem:[%s3 + $0x50] sm:$0xff]
    %v139 = vld [vmem:[%s3 + $0x58] sm:$0xff]
    %v140 = vld [vmem:[%s3 + $0x60] sm:$0xff]
    %v141 = vld [vmem:[%s3 + $0x68] sm:$0xff]
    %v142 = vld [vmem:[%s3 + $0x70] sm:$0xff]
    %v143 = vld [vmem:[%s3 + $0x78] sm:$0xff]
    %v144 = vld [vmem:[%s3 + $0x80] sm:$0xff]
    %v145 = vld [vmem:[%s3 + $0x88] sm:$0xff]
    %v146 = vld [vmem:[%s3 + $0x90] sm:$0xff]
    %v147 = vld [vmem:[%s3 + $0x98] sm:$0xff]
    %v148 = vld [vmem:[%s3 + $0xa0] sm:$0xff]
    %v149 = vld [vmem:[%s3 + $0xa8] sm:$0xff]
    %v150 = vld [vmem:[%s3 + $0xb0] sm:$0xff]
    %v151 = vld [vmem:[%s3 + $0xb8] sm:$0xff]
    %v152 = vld [vmem:[%s3 + $0xc0] sm:$0xff]
    %v153 = vld [vmem:[%s3 + $0xc8] sm:$0xff]
    %v154 = vld [vmem:[%s3 + $0xd0] sm:$0xff]
    %v155 = vld [vmem:[%s3 + $0xd8] sm:$0xff]
    %v156 = vld [vmem:[%s3 + $0xe0] sm:$0xff]
    %v157 = vld [vmem:[%s3 + $0xe8] sm:$0xff]
    %v158 = vld [vmem:[%s3 + $0xf0] sm:$0xff]
    %v159 = vld [vmem:[%s3 + $0xf8] sm:$0xff]
    %v160 = vld [vmem:[%s4] sm:$0x1]
    %v162 = vlaneseq
    %v163 = vshrl.u32 %v162, 7
    %v164 = vsub.s32 0, %v163
    %v165 = vrot.slane %v160, %v164
    %167 = vmatprep.subr.mxu0 0.0
    %168 = vmatpush1.msra.mxu0 %v128
    %169 = vmatprep.subr.mxu0 0.0
    %170 = vmatpush1.msra.mxu0 %v129
    %171 = vmatprep.subr.mxu0 0.0
    %172 = vmatpush1.msra.mxu0 %v130
    %173 = vmatprep.subr.mxu0 0.0
    %174 = vmatpush1.msra.mxu0 %v131
    %175 = vmatprep.subr.mxu0 0.0
    %176 = vmatpush1.msra.mxu0 %v132
    %177 = vmatprep.subr.mxu0 0.0
    %178 = vmatpush1.msra.mxu0 %v133
    %179 = vmatprep.subr.mxu0 0.0
    %180 = vmatpush1.msra.mxu0 %v134
    %181 = vmatprep.subr.mxu0 0.0
    %182 = vmatpush1.msra.mxu0 %v135
    %183 = vmatprep.subr.mxu0 0.0
    %184 = vmatpush1.msra.mxu0 %v136
    %185 = vmatprep.subr.mxu0 0.0
    %186 = vmatpush1.msra.mxu0 %v137
    %187 = vmatprep.subr.mxu0 0.0
    %188 = vmatpush1.msra.mxu0 %v138
    %189 = vmatprep.subr.mxu0 0.0
    %190 = vmatpush1.msra.mxu0 %v139
    %191 = vmatprep.subr.mxu0 0.0
    %192 = vmatpush1.msra.mxu0 %v140
    %193 = vmatprep.subr.mxu0 0.0
    %194 = vmatpush1.msra.mxu0 %v141
    %195 = vmatprep.subr.mxu0 0.0
    %196 = vmatpush1.msra.mxu0 %v142
    %197 = vmatprep.subr.mxu0 0.0
    %198 = vmatpush1.msra.mxu0 %v143
    %199 = vmatprep.subr.mxu0 0.0
    %200 = vmatpush1.msra.mxu0 %v144
    %201 = vmatprep.subr.mxu0 0.0
    %202 = vmatpush1.msra.mxu0 %v145
    %203 = vmatprep.subr.mxu0 0.0
    %204 = vmatpush1.msra.mxu0 %v146
    %205 = vmatprep.subr.mxu0 0.0
    %206 = vmatpush1.msra.mxu0 %v147
    %207 = vmatprep.subr.mxu0 0.0
    %208 = vmatpush1.msra.mxu0 %v148
    %209 = vmatprep.subr.mxu0 0.0
    %210 = vmatpush1.msra.mxu0 %v149
    %211 = vmatprep.subr.mxu0 0.0
    %212 = vmatpush1.msra.mxu0 %v150
    %213 = vmatprep.subr.mxu0 0.0
    %214 = vmatpush1.msra.mxu0 %v151
    %215 = vmatprep.subr.mxu0 0.0
    %216 = vmatpush1.msra.mxu0 %v152
    %217 = vmatprep.subr.mxu0 0.0
    %218 = vmatpush1.msra.mxu0 %v153
    %219 = vmatprep.subr.mxu0 0.0
    %220 = vmatpush1.msra.mxu0 %v154
    %221 = vmatprep.subr.mxu0 0.0
    %222 = vmatpush1.msra.mxu0 %v155
    %223 = vmatprep.subr.mxu0 0.0
    %224 = vmatpush1.msra.mxu0 %v156
    %225 = vmatprep.subr.mxu0 0.0
    %226 = vmatpush1.msra.mxu0 %v157
    %227 = vmatprep.subr.mxu0 0.0
    %228 = vmatpush1.msra.mxu0 %v158
    %229 = vmatprep.subr.mxu0 0.0
    %230 = vmatpush1.msra.mxu0 %v159
    %231 = vmatprep.mubr.f32.mxu0 %v127
    %232 = vmatmul.mubr.f32.gmra.mrb[0].mxu0 %v126
    %v233 = vpop.f32.mrb[0].mxu0
    %v234 = vadd.f32 %v165, %v233
    %v235 = vpop.f32.mrb[0].mxu0
    %236 = vdwg.mxu0
    %v237 = vld [vmem:[%s5] sm:$0xff]
    %v238 = vadd.f32 %v234, %v237
    %v239 = vlaneseq
    %v240 = vand.u32 %v239, 127
    %vm241 = vcmask 64512
    %v242 = vsel %vm241, %v238, -inf
    %243 = vmax.xlane.f32.xlu0 %v242
    %v244 = vpop.xlane.xlu0 %243
    %vm245 = vcmp.eq.f32.partialorder %v238, %v244
    %v246 = vsel %vm245, %v240, 8
    %v247 = vsel %vm241, %v246, 2147483647
    %v248 = vand.u32 %v247, 65535
    %v249 = vshra.s32 %v247, 16
    %v250 = vcvt.s32.f32 %v248
    %v251 = vcvt.s32.f32 %v249
    %252 = vmin.xlane.f32.xlu0 %v251
    %v253 = vpop.xlane.xlu0 %252
    %vm254 = vcmp.eq.f32.partialorder %v251, %v253
    %v255 = vsel %vm254, %v250, inf
    %256 = vmin.xlane.f32.xlu0 %v255
    %v257 = vpop.xlane.xlu0 %256
    %v258 = vcvt.f32.s32 %v257
    %v259 = vcvt.f32.s32 %v253
    %v260 = vshll.u32 %v259, 16
    %v261 = vadd.s32 %v260, %v258
    %vm262 = vcmp.eq.s32.totalorder %v240, %v261
    %v263 = vsel %vm262, 1, 0
    %v264 = vcvt.s32.f32 %v263
    %265 = vst.msk [vmem:[#allocation2] sm:$0xff] %vm241, %v264
    %v266 = vld [vmem:[%s6] sm:$0xff]
    %v267 = vadd.f32 %v234, %v266
    %v268 = vsel %vm241, %v267, -inf
    %269 = vmax.xlane.f32.xlu0 %v268
    %v270 = vpop.xlane.xlu0 %269
    %v271 = vsub.f32 %v267, %v270
    %v272 = vmul.f32 %v271, 1.442695
    %v273 = vpow.pop %v272
    %v274 = vsel %vm241, %v273, 0.0
    %275 = vadd.xlane.f32.xlu0 %v274
    %v276 = vpop.xlane.xlu0 %275
    %v277 = vrcp.pop %v276
    %v278 = vmul.f32 %v273, %v277
    %279 = vst.msk [vmem:[#allocation4] sm:$0xff] %vm241, %v278
    // Predicated region
    $region30: #{tpu_custom_call.1} parent=1 // pred_check
      _
    $region31: #{tpu_custom_call.1} parent=1 // pred_check_branch
      %281 = sbr.rel (0) target = $region33
    $region32: #{tpu_custom_call.1} parent=1 // pred_region
      %s283 = ssub.s32 128, 128
      %284 = vsyncadd [#allocation3], %s283
      %s286 = sshll.u32 [#allocation2], 4
      %s287 = int_to_ptr.vmem [resolvable:$true] %s286
      %289 = dma.vmem_to_hbm [thread:$0]  %s287, 128, %s7, [#allocation3]
    $region33: #{tpu_custom_call.1} parent=1 // pred_fallthru
      _
    // Predicated region
    $region34: #{tpu_custom_call.1} parent=1 // pred_check
      _
    $region35: #{tpu_custom_call.1} parent=1 // pred_check_branch
      %291 = sbr.rel (0) target = $region37
    $region36: #{tpu_custom_call.1} parent=1 // pred_region
      %s293 = ssub.s32 128, 128
      %294 = vsyncadd [#allocation5], %s293
      %s296 = sshll.u32 [#allocation4], 4
      %s297 = int_to_ptr.vmem [resolvable:$true] %s296
      %299 = dma.vmem_to_hbm [thread:$0]  %s297, 128, %s8, [#allocation5]
    $region37: #{tpu_custom_call.1} parent=1 // pred_fallthru
      _
    // Predicated region
    $region38: #{tpu_custom_call.1} parent=1 // pred_check
      _
    $region39: #{tpu_custom_call.1} parent=1 // pred_check_branch
      %301 = sbr.rel (0) target = $region41
    $region40: #{tpu_custom_call.1} parent=1 // pred_region
      %302 = dma.done [#allocation3], 128
    $region41: #{tpu_custom_call.1} parent=1 // pred_fallthru
      _
    // Predicated region
    $region42: #{tpu_custom_call.1} parent=1 // pred_check
      _
    $region43: #{tpu_custom_call.1} parent=1 // pred_check_branch
      %304 = sbr.rel (0) target = $region45
    $region44: #{tpu_custom_call.1} parent=1 // pred_region
      %305 = dma.done [#allocation5], 128
    $region45: #{tpu_custom_call.1} parent=1 // pred_fallthru
      _
    %306 = vsyncpa [#allocation3], 1
    %307 = vsyncpa [#allocation5], 1

</llo_original>
